<compile_context>
chip_gen: v7x
topology: tpu7x:2x2x1
jax: 0.10.0
libtpu: 0.0.40
codegen_flags: <defaults>
</compile_context>

<pallas_src>
import functools
import math

import jax
import jax.numpy as jnp
from jax.experimental import pallas as pl
from jax.experimental.pallas import tpu as pltpu

NUM_HIDDEN = 5
DROPOUT_RATE = 0  # p = 0 -> identity; no RNG needed.

LANE = 128      # lane width: output/feature dims padded to this
SUBLANE = 8     # sublane width: batch padded to a multiple of this


def _round_up(n, m):
    return ((n + m - 1) // m) * m


# ----------------------------- Pallas kernel ------------------------------ #

def _dqn_fused_kernel(x_ref, w_ref, b_ref, o_ref, *, num_layers, k_pad):
    """Entire MLP in one gridless kernel body.

    x_ref: (Bp, Kp)    padded f32 activations (Kp = fan_in padded to 32)
    w_ref: (L, Kp, D)  padded, stacked bf16 weights (fan_in sublanes, fan_out lanes)
    b_ref: (L, 1, D)   padded, stacked f32 biases (row layout -> broadcast add)
    o_ref: (Bp, D)     padded f32 output (real logits in the first out_features lanes)
    """
    h = x_ref[...]                                   # (Bp, Kp) f32
    for l in range(num_layers):                      # unrolled at trace time (L == 8)
        w = w_ref[l].astype(jnp.float32)             # (Kp, D): one cheap VPU cast per layer
        y = jnp.dot(h, w, preferred_element_type=jnp.float32) + b_ref[l]   # (Bp, D)
        if l < num_layers - 1:
            # ReLU (+ Dropout(p=0) == identity). Only the first k_pad lanes feed
            # the next contraction (every fan_in <= k_pad; padded lanes are 0).
            h = jnp.maximum(y[:, :k_pad], 0.0)
        else:
            # Exact sigmoid via a single EUP push: sigmoid(y) = 0.5*tanh(0.5*y)+0.5.
            h = 0.5 * jnp.tanh(0.5 * y) + 0.5
    # NOTE: padded output lanes hold sigmoid(0)=0.5; the wrapper slices them off.
    o_ref[...] = h.astype(o_ref.dtype)


def dqn_forward(x, params):
    """Fused forward pass: one gridless pallas_call over padded, stacked params."""
    w_stack = params["w"]               # (L, Kp, D) bf16
    b_stack = params["b"]               # (L, 1, D)  f32
    out_features = params["out_features"]
    L, Kp, D = w_stack.shape

    B, Fin = x.shape
    Bp = _round_up(max(B, SUBLANE), SUBLANE)
    # Zero-pad batch to a sublane multiple and features to Kp. allow_input_fusion
    # below lets XLA fold this pad into the pallas custom call.
    x_pad = jnp.pad(x.astype(jnp.float32), ((0, Bp - B), (0, Kp - Fin)))

    kernel = functools.partial(_dqn_fused_kernel, num_layers=L, k_pad=Kp)
    # TODO(synk): for large inference batches, add a batch grid axis with block
    # (TB~256-512, D), constant index_maps on w/b (weights stay VMEM-resident
    # across steps), and mark it "parallel" so v7x shards rows over its 2 TCs.
    out_pad = pl.pallas_call(
        kernel,
        out_shape=jax.ShapeDtypeStruct((Bp, D), jnp.float32),
        in_specs=[
            pl.BlockSpec(memory_space=pltpu.MemorySpace.VMEM),  # x_pad
            pl.BlockSpec(memory_space=pltpu.MemorySpace.VMEM),  # w_stack (bf16, 64 KiB)
            pl.BlockSpec(memory_space=pltpu.MemorySpace.VMEM),  # b_stack
        ],
        out_specs=pl.BlockSpec(memory_space=pltpu.MemorySpace.VMEM),
        compiler_params=pltpu.CompilerParams(
            allow_input_fusion=[True, False, False]),
    )(x_pad, w_stack, b_stack)

    return out_pad[:B, :out_features]


# --------------------------- Parameter creation ---------------------------- #

def init_linear_params(key, fan_in, fan_out):
    """Mimic torch.nn.Linear default init: U(-1/sqrt(fan_in), 1/sqrt(fan_in))."""
    kw, kb = jax.random.split(key)
    bound = 1.0 / math.sqrt(fan_in)
    w = jax.random.uniform(kw, (fan_in, fan_out), jnp.float32, -bound, bound)
    b = jax.random.uniform(kb, (fan_out,), jnp.float32, -bound, bound)
    return w, b


def build_dqn_params(key, input_size, hidden_size, output_size):
    """Build per-layer params plus the zero-padded, stacked tensors for the kernel."""
    dims = [(input_size, hidden_size)]
    for _ in range(NUM_HIDDEN - 1):
        dims.append((hidden_size, hidden_size))
    dims.append((hidden_size, hidden_size // 2))
    dims.append((hidden_size // 2, hidden_size // 4))
    dims.append((hidden_size // 4, output_size))
    L = len(dims)  # == 8 linear layers

    # Output (lane) dim padded to 128 -> lane-dense matmul results and stores.
    D = _round_up(max(fo for _, fo in dims), LANE)
    # Contraction (fan_in) dim only lives on sublanes: pad to a multiple of 16
    # (bf16 sublane tile) instead of 128 -> 4x fewer weight bytes.
    Kp = _round_up(max(max(fi for fi, _ in dims), 2 * SUBLANE), 2 * SUBLANE)
    assert Kp <= D, (Kp, D)

    keys = jax.random.split(key, L)
    raw = []
    w_stack = jnp.zeros((L, Kp, D), jnp.bfloat16)
    b_stack = jnp.zeros((L, 1, D), jnp.float32)
    for l, (k, (fi, fo)) in enumerate(zip(keys, dims)):
        w, b = init_linear_params(k, fi, fo)
        w_bf16 = w.astype(jnp.bfloat16)
        # Keep the bf16-quantized weights (in f32) for the reference so kernel
        # and pure-JAX check agree to f32 rounding.
        raw.append((w_bf16.astype(jnp.float32), b))
        w_stack = w_stack.at[l, :fi, :fo].set(w_bf16)
        b_stack = b_stack.at[l, 0, :fo].set(b)

    return {"w": w_stack, "b": b_stack, "out_features": output_size, "raw": raw}


# ---------------------------------- Main ----------------------------------- #

if __name__ == "__main__":
    batch = 8
    input_size = 16
    hidden_size = 32
    output_size = 4

    key = jax.random.PRNGKey(0)
    k_params, k_x = jax.random.split(key)

    params = build_dqn_params(k_params, input_size, hidden_size, output_size)
    x = jax.random.normal(k_x, (batch, input_size), jnp.float32)

    fwd = jax.jit(lambda xx: dqn_forward(xx, params))
    out = fwd(x)
    jax.block_until_ready(out)

    # Pure-JAX reference on the (bf16-quantized) per-layer params, f32 math.
    ref = x
    for i, (w, b) in enumerate(params["raw"]):
        ref = jnp.dot(ref, w, precision=jax.lax.Precision.HIGHEST) + b
        ref = jax.nn.sigmoid(ref) if i == len(params["raw"]) - 1 else jnp.maximum(ref, 0.0)

    assert out.shape == (batch, output_size), out.shape
    assert out.dtype == jnp.float32
    assert bool(jnp.all(jnp.isfinite(out)))
    assert bool(jnp.allclose(out, ref, atol=2e-3, rtol=2e-3)), (
        float(jnp.max(jnp.abs(out - ref))))

    print("KERNEL_OK")
</pallas_src>

<mosaic_0001>
module attributes {stable_mosaic.version = 11 : i64} {
  func.func @_dqn_fused_kernel(%arg0: memref<8x32xf32, #tpu.memory_space<vmem>>, %arg1: memref<8x32x128xbf16, #tpu.memory_space<vmem>>, %arg2: memref<8x1x128xf32, #tpu.memory_space<vmem>>, %arg3: memref<8x128xf32, #tpu.memory_space<vmem>>) attributes {dimension_semantics = [], scalar_prefetch = 0 : i64, scratch_operands = 0 : i64, tpu.core_type = #tpu.core_type<tc>} {
    %c0 = arith.constant 0 : index
    %c0_0 = arith.constant 0 : index
    %0 = vector.load %arg0[%c0, %c0_0] : memref<8x32xf32, #tpu.memory_space<vmem>>, vector<8x32xf32>
    %c0_1 = arith.constant 0 : index
    %c0_2 = arith.constant 0 : index
    %c0_3 = arith.constant 0 : index
    %1 = vector.load %arg1[%c0_1, %c0_2, %c0_3] : memref<8x32x128xbf16, #tpu.memory_space<vmem>>, vector<1x32x128xbf16>
    %2 = vector.shape_cast %1 : vector<1x32x128xbf16> to vector<32x128xbf16>
    %3 = arith.extf %2 : vector<32x128xbf16> to vector<32x128xf32>
    %cst = arith.constant dense<0.000000e+00> : vector<8x128xf32>
    %4 = tpu.matmul %0, %3, %cst {dimension_numbers = #tpu.dot_dimension_numbers<[1], [0], [0], [1], [0, 0, 1, 1], [], []>} : vector<8x32xf32>, vector<32x128xf32>, vector<8x128xf32> -> vector<8x128xf32>
    %c0_4 = arith.constant 0 : index
    %c0_5 = arith.constant 0 : index
    %c0_6 = arith.constant 0 : index
    %5 = vector.load %arg2[%c0_4, %c0_5, %c0_6] : memref<8x1x128xf32, #tpu.memory_space<vmem>>, vector<1x1x128xf32>
    %6 = vector.shape_cast %5 : vector<1x1x128xf32> to vector<1x128xf32>
    %7 = vector.broadcast %6 : vector<1x128xf32> to vector<8x128xf32>
    %8 = arith.addf %4, %7 : vector<8x128xf32>
    %9 = vector.extract_strided_slice %8 {offsets = [0, 0], sizes = [8, 32], strides = [1, 1]} : vector<8x128xf32> to vector<8x32xf32>
    %cst_7 = arith.constant 0.000000e+00 : f32
    %10 = vector.broadcast %cst_7 : f32 to vector<8x32xf32>
    %11 = arith.maximumf %9, %10 : vector<8x32xf32>
    %c1 = arith.constant 1 : index
    %c0_8 = arith.constant 0 : index
    %c0_9 = arith.constant 0 : index
    %12 = vector.load %arg1[%c1, %c0_8, %c0_9] : memref<8x32x128xbf16, #tpu.memory_space<vmem>>, vector<1x32x128xbf16>
    %13 = vector.shape_cast %12 : vector<1x32x128xbf16> to vector<32x128xbf16>
    %14 = arith.extf %13 : vector<32x128xbf16> to vector<32x128xf32>
    %cst_10 = arith.constant dense<0.000000e+00> : vector<8x128xf32>
    %15 = tpu.matmul %11, %14, %cst_10 {dimension_numbers = #tpu.dot_dimension_numbers<[1], [0], [0], [1], [0, 0, 1, 1], [], []>} : vector<8x32xf32>, vector<32x128xf32>, vector<8x128xf32> -> vector<8x128xf32>
    %c1_11 = arith.constant 1 : index
    %c0_12 = arith.constant 0 : index
    %c0_13 = arith.constant 0 : index
    %16 = vector.load %arg2[%c1_11, %c0_12, %c0_13] : memref<8x1x128xf32, #tpu.memory_space<vmem>>, vector<1x1x128xf32>
    %17 = vector.shape_cast %16 : vector<1x1x128xf32> to vector<1x128xf32>
    %18 = vector.broadcast %17 : vector<1x128xf32> to vector<8x128xf32>
    %19 = arith.addf %15, %18 : vector<8x128xf32>
    %20 = vector.extract_strided_slice %19 {offsets = [0, 0], sizes = [8, 32], strides = [1, 1]} : vector<8x128xf32> to vector<8x32xf32>
    %cst_14 = arith.constant 0.000000e+00 : f32
    %21 = vector.broadcast %cst_14 : f32 to vector<8x32xf32>
    %22 = arith.maximumf %20, %21 : vector<8x32xf32>
    %c2 = arith.constant 2 : index
    %c0_15 = arith.constant 0 : index
    %c0_16 = arith.constant 0 : index
    %23 = vector.load %arg1[%c2, %c0_15, %c0_16] : memref<8x32x128xbf16, #tpu.memory_space<vmem>>, vector<1x32x128xbf16>
    %24 = vector.shape_cast %23 : vector<1x32x128xbf16> to vector<32x128xbf16>
    %25 = arith.extf %24 : vector<32x128xbf16> to vector<32x128xf32>
    %cst_17 = arith.constant dense<0.000000e+00> : vector<8x128xf32>
    %26 = tpu.matmul %22, %25, %cst_17 {dimension_numbers = #tpu.dot_dimension_numbers<[1], [0], [0], [1], [0, 0, 1, 1], [], []>} : vector<8x32xf32>, vector<32x128xf32>, vector<8x128xf32> -> vector<8x128xf32>
    %c2_18 = arith.constant 2 : index
    %c0_19 = arith.constant 0 : index
    %c0_20 = arith.constant 0 : index
    %27 = vector.load %arg2[%c2_18, %c0_19, %c0_20] : memref<8x1x128xf32, #tpu.memory_space<vmem>>, vector<1x1x128xf32>
    %28 = vector.shape_cast %27 : vector<1x1x128xf32> to vector<1x128xf32>
    %29 = vector.broadcast %28 : vector<1x128xf32> to vector<8x128xf32>
    %30 = arith.addf %26, %29 : vector<8x128xf32>
    %31 = vector.extract_strided_slice %30 {offsets = [0, 0], sizes = [8, 32], strides = [1, 1]} : vector<8x128xf32> to vector<8x32xf32>
    %cst_21 = arith.constant 0.000000e+00 : f32
    %32 = vector.broadcast %cst_21 : f32 to vector<8x32xf32>
    %33 = arith.maximumf %31, %32 : vector<8x32xf32>
    %c3 = arith.constant 3 : index
    %c0_22 = arith.constant 0 : index
    %c0_23 = arith.constant 0 : index
    %34 = vector.load %arg1[%c3, %c0_22, %c0_23] : memref<8x32x128xbf16, #tpu.memory_space<vmem>>, vector<1x32x128xbf16>
    %35 = vector.shape_cast %34 : vector<1x32x128xbf16> to vector<32x128xbf16>
    %36 = arith.extf %35 : vector<32x128xbf16> to vector<32x128xf32>
    %cst_24 = arith.constant dense<0.000000e+00> : vector<8x128xf32>
    %37 = tpu.matmul %33, %36, %cst_24 {dimension_numbers = #tpu.dot_dimension_numbers<[1], [0], [0], [1], [0, 0, 1, 1], [], []>} : vector<8x32xf32>, vector<32x128xf32>, vector<8x128xf32> -> vector<8x128xf32>
    %c3_25 = arith.constant 3 : index
    %c0_26 = arith.constant 0 : index
    %c0_27 = arith.constant 0 : index
    %38 = vector.load %arg2[%c3_25, %c0_26, %c0_27] : memref<8x1x128xf32, #tpu.memory_space<vmem>>, vector<1x1x128xf32>
    %39 = vector.shape_cast %38 : vector<1x1x128xf32> to vector<1x128xf32>
    %40 = vector.broadcast %39 : vector<1x128xf32> to vector<8x128xf32>
    %41 = arith.addf %37, %40 : vector<8x128xf32>
    %42 = vector.extract_strided_slice %41 {offsets = [0, 0], sizes = [8, 32], strides = [1, 1]} : vector<8x128xf32> to vector<8x32xf32>
    %cst_28 = arith.constant 0.000000e+00 : f32
    %43 = vector.broadcast %cst_28 : f32 to vector<8x32xf32>
    %44 = arith.maximumf %42, %43 : vector<8x32xf32>
    %c4 = arith.constant 4 : index
    %c0_29 = arith.constant 0 : index
    %c0_30 = arith.constant 0 : index
    %45 = vector.load %arg1[%c4, %c0_29, %c0_30] : memref<8x32x128xbf16, #tpu.memory_space<vmem>>, vector<1x32x128xbf16>
    %46 = vector.shape_cast %45 : vector<1x32x128xbf16> to vector<32x128xbf16>
    %47 = arith.extf %46 : vector<32x128xbf16> to vector<32x128xf32>
    %cst_31 = arith.constant dense<0.000000e+00> : vector<8x128xf32>
    %48 = tpu.matmul %44, %47, %cst_31 {dimension_numbers = #tpu.dot_dimension_numbers<[1], [0], [0], [1], [0, 0, 1, 1], [], []>} : vector<8x32xf32>, vector<32x128xf32>, vector<8x128xf32> -> vector<8x128xf32>
    %c4_32 = arith.constant 4 : index
    %c0_33 = arith.constant 0 : index
    %c0_34 = arith.constant 0 : index
    %49 = vector.load %arg2[%c4_32, %c0_33, %c0_34] : memref<8x1x128xf32, #tpu.memory_space<vmem>>, vector<1x1x128xf32>
    %50 = vector.shape_cast %49 : vector<1x1x128xf32> to vector<1x128xf32>
    %51 = vector.broadcast %50 : vector<1x128xf32> to vector<8x128xf32>
    %52 = arith.addf %48, %51 : vector<8x128xf32>
    %53 = vector.extract_strided_slice %52 {offsets = [0, 0], sizes = [8, 32], strides = [1, 1]} : vector<8x128xf32> to vector<8x32xf32>
    %cst_35 = arith.constant 0.000000e+00 : f32
    %54 = vector.broadcast %cst_35 : f32 to vector<8x32xf32>
    %55 = arith.maximumf %53, %54 : vector<8x32xf32>
    %c5 = arith.constant 5 : index
    %c0_36 = arith.constant 0 : index
    %c0_37 = arith.constant 0 : index
    %56 = vector.load %arg1[%c5, %c0_36, %c0_37] : memref<8x32x128xbf16, #tpu.memory_space<vmem>>, vector<1x32x128xbf16>
    %57 = vector.shape_cast %56 : vector<1x32x128xbf16> to vector<32x128xbf16>
    %58 = arith.extf %57 : vector<32x128xbf16> to vector<32x128xf32>
    %cst_38 = arith.constant dense<0.000000e+00> : vector<8x128xf32>
    %59 = tpu.matmul %55, %58, %cst_38 {dimension_numbers = #tpu.dot_dimension_numbers<[1], [0], [0], [1], [0, 0, 1, 1], [], []>} : vector<8x32xf32>, vector<32x128xf32>, vector<8x128xf32> -> vector<8x128xf32>
    %c5_39 = arith.constant 5 : index
    %c0_40 = arith.constant 0 : index
    %c0_41 = arith.constant 0 : index
    %60 = vector.load %arg2[%c5_39, %c0_40, %c0_41] : memref<8x1x128xf32, #tpu.memory_space<vmem>>, vector<1x1x128xf32>
    %61 = vector.shape_cast %60 : vector<1x1x128xf32> to vector<1x128xf32>
    %62 = vector.broadcast %61 : vector<1x128xf32> to vector<8x128xf32>
    %63 = arith.addf %59, %62 : vector<8x128xf32>
    %64 = vector.extract_strided_slice %63 {offsets = [0, 0], sizes = [8, 32], strides = [1, 1]} : vector<8x128xf32> to vector<8x32xf32>
    %cst_42 = arith.constant 0.000000e+00 : f32
    %65 = vector.broadcast %cst_42 : f32 to vector<8x32xf32>
    %66 = arith.maximumf %64, %65 : vector<8x32xf32>
    %c6 = arith.constant 6 : index
    %c0_43 = arith.constant 0 : index
    %c0_44 = arith.constant 0 : index
    %67 = vector.load %arg1[%c6, %c0_43, %c0_44] : memref<8x32x128xbf16, #tpu.memory_space<vmem>>, vector<1x32x128xbf16>
    %68 = vector.shape_cast %67 : vector<1x32x128xbf16> to vector<32x128xbf16>
    %69 = arith.extf %68 : vector<32x128xbf16> to vector<32x128xf32>
    %cst_45 = arith.constant dense<0.000000e+00> : vector<8x128xf32>
    %70 = tpu.matmul %66, %69, %cst_45 {dimension_numbers = #tpu.dot_dimension_numbers<[1], [0], [0], [1], [0, 0, 1, 1], [], []>} : vector<8x32xf32>, vector<32x128xf32>, vector<8x128xf32> -> vector<8x128xf32>
    %c6_46 = arith.constant 6 : index
    %c0_47 = arith.constant 0 : index
    %c0_48 = arith.constant 0 : index
    %71 = vector.load %arg2[%c6_46, %c0_47, %c0_48] : memref<8x1x128xf32, #tpu.memory_space<vmem>>, vector<1x1x128xf32>
    %72 = vector.shape_cast %71 : vector<1x1x128xf32> to vector<1x128xf32>
    %73 = vector.broadcast %72 : vector<1x128xf32> to vector<8x128xf32>
    %74 = arith.addf %70, %73 : vector<8x128xf32>
    %75 = vector.extract_strided_slice %74 {offsets = [0, 0], sizes = [8, 32], strides = [1, 1]} : vector<8x128xf32> to vector<8x32xf32>
    %cst_49 = arith.constant 0.000000e+00 : f32
    %76 = vector.broadcast %cst_49 : f32 to vector<8x32xf32>
    %77 = arith.maximumf %75, %76 : vector<8x32xf32>
    %c7 = arith.constant 7 : index
    %c0_50 = arith.constant 0 : index
    %c0_51 = arith.constant 0 : index
    %78 = vector.load %arg1[%c7, %c0_50, %c0_51] : memref<8x32x128xbf16, #tpu.memory_space<vmem>>, vector<1x32x128xbf16>
    %79 = vector.shape_cast %78 : vector<1x32x128xbf16> to vector<32x128xbf16>
    %80 = arith.extf %79 : vector<32x128xbf16> to vector<32x128xf32>
    %cst_52 = arith.constant dense<0.000000e+00> : vector<8x128xf32>
    %81 = tpu.matmul %77, %80, %cst_52 {dimension_numbers = #tpu.dot_dimension_numbers<[1], [0], [0], [1], [0, 0, 1, 1], [], []>} : vector<8x32xf32>, vector<32x128xf32>, vector<8x128xf32> -> vector<8x128xf32>
    %c7_53 = arith.constant 7 : index
    %c0_54 = arith.constant 0 : index
    %c0_55 = arith.constant 0 : index
    %82 = vector.load %arg2[%c7_53, %c0_54, %c0_55] : memref<8x1x128xf32, #tpu.memory_space<vmem>>, vector<1x1x128xf32>
    %83 = vector.shape_cast %82 : vector<1x1x128xf32> to vector<1x128xf32>
    %84 = vector.broadcast %83 : vector<1x128xf32> to vector<8x128xf32>
    %85 = arith.addf %81, %84 : vector<8x128xf32>
    %cst_56 = arith.constant 5.000000e-01 : f32
    %86 = vector.broadcast %cst_56 : f32 to vector<8x128xf32>
    %87 = arith.mulf %86, %85 : vector<8x128xf32>
    %88 = math.tanh %87 : vector<8x128xf32>
    %cst_57 = arith.constant 5.000000e-01 : f32
    %89 = vector.broadcast %cst_57 : f32 to vector<8x128xf32>
    %90 = arith.mulf %89, %88 : vector<8x128xf32>
    %cst_58 = arith.constant 5.000000e-01 : f32
    %91 = vector.broadcast %cst_58 : f32 to vector<8x128xf32>
    %92 = arith.addf %90, %91 : vector<8x128xf32>
    %c0_59 = arith.constant 0 : index
    %c0_60 = arith.constant 0 : index
    %93 = vector.load %arg3[%c0_59, %c0_60] : memref<8x128xf32, #tpu.memory_space<vmem>>, vector<8x128xf32>
    tpu.vector_store %arg3[%c0_59, %c0_60], %92 {strides = array<i32>} : memref<8x128xf32, #tpu.memory_space<vmem>>, vector<8x128xf32>,
    return
  }
}

</mosaic_0001>

<llo_original>
// kernel: _lambda_.2
$region0: #{_lambda_.2}
  #allocation0 [shape = 'u32[]', space=smem, size = 0x4, offset = 0x4, fixed_abs, tag = 'smem constant byte address 0x4 - core index']
  #allocation1 [shape = 'u32[144,128]{1,0:T(1,128)}', space=vmem, size = 0x12000, scoped, tag = 'internal scratch']
  #allocation2 [shape = 'u32[2048]{0}', space=vmem, size = 0x2000, scoped, tag = 'scoped memory for _lambda_.2']
  #allocation3 [shape = 'u32[2048]{0}', space=vmem, size = 0x2000, scoped, tag = 'scoped memory for _lambda_.2']
  #allocation4 [shape = 'u32[2048]{0}', space=vmem, size = 0x2000, scoped, tag = 'scoped memory for _lambda_.2']
  #allocation5 [shape = 'u32[2048]{0}', space=vmem, size = 0x2000, scoped, tag = 'scoped memory for _lambda_.2']
  #allocation6 [shape = 'u32[2048]{0}', space=vmem, size = 0x2000, scoped, tag = 'scoped memory for _lambda_.2']
  %s0 = inlined_call_operand.hbm [shape: bf16[8,32,128], index: 0, kind: input, shape index: {}]
  %s1 = inlined_call_operand.hbm [shape: f32[8,1,128], index: 1, kind: input, shape index: {}]
  %s2 = inlined_call_operand.hbm [shape: f32[8,16], index: 2, kind: input, shape index: {}]
  %s3 = inlined_call_operand.<no memory space> [shape: f32[], index: 3, kind: input, shape index: {}]
  %s4 = inlined_call_operand.vmem [shape: f32[8,128], index: 4, kind: output, shape index: {}]
  %s5 = sld [smem:[#allocation0]]
  $region34: #{_lambda_.2} parent=0
    _
  %s7 = ssub.s32 1, %s5
  %s8 = scalar_select 0, %s7, %s5
  %v9 = vstv %s3
  $region1: #{_lambda_.2} parent=0
    #allocation7 [shape = 'u8[4096]{0}', space=vmem, size = 0x1000, scoped, tag = 'operand span for operand 2']
    #allocation8 [shape = 's32[1]{0}', space=sflag, size = 0x4, scoped, tag = 'scoped memory for _lambda_.2']
    #allocation9 [shape = 'u8[65536]{0}', space=vmem, size = 0x10000, scoped, tag = 'input window, operand 1, single buffered']
    #allocation10 [shape = 's32[1]{0}', space=sflag, size = 0x4, scoped, tag = 'scoped memory for _lambda_.2']
    #allocation11 [shape = 'u8[4096]{0}', space=vmem, size = 0x1000, scoped, tag = 'input window, operand 2, single buffered']
    #allocation12 [shape = 'u8[4096]{0}', space=vmem, size = 0x1000, dematerialized = true, scoped, tag = 'FusionAdapter Buffer %fusion.1 = f32[8,32]{1,0:T(8,128)} fusion(%param_2.1, %param_3), kind=kLoop, calls=%fused_computation.1.clone, metadata={op_name="jit(<lambda>)/jit(_pad)/pad" stack_frame_id=2}']
    %10 = vsyncpa [#allocation8], 0
    %11 = vsyncpa [#allocation10], 0
    // Predicated region
    $region2: #{_lambda_.2} parent=1 // pred_check
      _
    $region3: #{_lambda_.2} parent=1 // pred_check_branch
      %13 = sbr.rel (0) target = $region5
    $region4: #{_lambda_.2} parent=1 // pred_region
      %s15 = ssub.s32 128, 128
      %16 = vsyncadd [#allocation8], %s15
      %s18 = sshll.u32 [#allocation7], 4
      %s19 = int_to_ptr.vmem [resolvable:$true] %s18
      %21 = dma.hbm_to_vmem [thread:$0]  %s2, 128, %s19, [#allocation8]
    $region5: #{_lambda_.2} parent=1 // pred_fallthru
      _
    // Predicated region
    $region6: #{_lambda_.2} parent=1 // pred_check
      _
    $region7: #{_lambda_.2} parent=1 // pred_check_branch
      %23 = sbr.rel (0) target = $region9
    $region8: #{_lambda_.2} parent=1 // pred_region
      %s25 = ssub.s32 2048, 2048
      %26 = vsyncadd [#allocation10], %s25
      %s27 = sshll.u32 [#allocation9], 4
      %s28 = int_to_ptr.vmem [resolvable:$true] %s27
      %33 = dma.hbm_to_vmem [thread:$0]  %s0, 2048, %s28, [#allocation10], 128, 128, 8
    $region9: #{_lambda_.2} parent=1 // pred_fallthru
      _
    // Predicated region
    $region10: #{_lambda_.2} parent=1 // pred_check
      _
    $region11: #{_lambda_.2} parent=1 // pred_check_branch
      %35 = sbr.rel (0) target = $region13
    $region12: #{_lambda_.2} parent=1 // pred_region
      %s37 = ssub.s32 128, 128
      %38 = vsyncadd [#allocation10], %s37
      %s39 = sshll.u32 [#allocation11], 4
      %s40 = int_to_ptr.vmem [resolvable:$true] %s39
      %45 = dma.hbm_to_vmem [thread:$0]  %s1, 128, %s40, [#allocation10], 16, 16, 1
    $region13: #{_lambda_.2} parent=1 // pred_fallthru
      _
    // Predicated region
    $region14: #{_lambda_.2} parent=1 // pred_check
      _
    $region15: #{_lambda_.2} parent=1 // pred_check_branch
      %47 = sbr.rel (0) target = $region17
    $region16: #{_lambda_.2} parent=1 // pred_region
      %48 = dma.done [#allocation8], 128
    $region17: #{_lambda_.2} parent=1 // pred_fallthru
      _
    // Predicated region
    $region18: #{_lambda_.2} parent=1 // pred_check
      _
    $region19: #{_lambda_.2} parent=1 // pred_check_branch
      %50 = sbr.rel (0) target = $region21
    $region20: #{_lambda_.2} parent=1 // pred_region
      %51 = dma.done [#allocation10], 2048
    $region21: #{_lambda_.2} parent=1 // pred_fallthru
      _
    // Predicated region
    $region22: #{_lambda_.2} parent=1 // pred_check
      _
    $region23: #{_lambda_.2} parent=1 // pred_check_branch
      %53 = sbr.rel (0) target = $region25
    $region24: #{_lambda_.2} parent=1 // pred_region
      %54 = dma.done [#allocation10], 128
    $region25: #{_lambda_.2} parent=1 // pred_fallthru
      _
    %v55 = vld [vmem:[#allocation7] sm:$0xff]
    %v56 = vlaneseq
    %v57 = vand.u32 %v56, 127
    %vm59 = vcmp.lt.s32.totalorder %v57, 16
    %v60 = vsel %vm59, %v55, %v9
    %62 = vst [vmem:[#allocation12] sm:$0xff] %v60
    %v63 = vld [vmem:[#allocation12] sm:$0xff]
    %v64 = vld [vmem:[#allocation9] sm:$0xff]
    %v65 = vld [vmem:[#allocation9 + $0x8] sm:$0xff]
    %v66 = vunpack.c.l.bf16 %v64
    %v67 = vunpack.c.h.bf16 %v64
    %v68 = vunpack.c.l.bf16 %v65
    %v69 = vunpack.c.h.bf16 %v65
    %v70 = vld [vmem:[#allocation11] sm:$0x1]
    %v72 = vlaneseq
    %v73 = vshrl.u32 %v72, 7
    %v74 = vsub.s32 0, %v73
    %v75 = vrot.slane %v70, %v74
    %vm77 = vcmask 261120
    %v79 = vsel %vm77, %v63, 0
    %81 = vmatprep.subr.mxu0 0.0
    %82 = vmatpush1.msra.mxu0 %v66
    %83 = vmatprep.subr.mxu0 0.0
    %84 = vmatpush1.msra.mxu0 %v67
    %85 = vmatprep.subr.mxu0 0.0
    %86 = vmatpush1.msra.mxu0 %v68
    %87 = vmatprep.subr.mxu0 0.0
    %88 = vmatpush1.msra.mxu0 %v69
    %89 = vmatprep.subr.mxu0 0.0
    %90 = vmatpush1.msra.mxu0 0.0
    %91 = vmatprep.subr.mxu0 0.0
    %92 = vmatpush1.msra.mxu0 0.0
    %93 = vmatprep.subr.mxu0 0.0
    %94 = vmatpush1.msra.mxu0 0.0
    %95 = vmatprep.subr.mxu0 0.0
    %96 = vmatpush1.msra.mxu0 0.0
    %97 = vmatprep.subr.mxu0 0.0
    %98 = vmatpush1.msra.mxu0 0.0
    %99 = vmatprep.subr.mxu0 0.0
    %100 = vmatpush1.msra.mxu0 0.0
    %101 = vmatprep.subr.mxu0 0.0
    %102 = vmatpush1.msra.mxu0 0.0
    %103 = vmatprep.subr.mxu0 0.0
    %104 = vmatpush1.msra.mxu0 0.0
    %105 = vmatprep.subr.mxu0 0.0
    %106 = vmatpush1.msra.mxu0 0.0
    %107 = vmatprep.subr.mxu0 0.0
    %108 = vmatpush1.msra.mxu0 0.0
    %109 = vmatprep.subr.mxu0 0.0
    %110 = vmatpush1.msra.mxu0 0.0
    %111 = vmatprep.subr.mxu0 0.0
    %112 = vmatpush1.msra.mxu0 0.0
    %113 = vmatprep.subr.mxu0 0.0
    %114 = vmatpush1.msra.mxu0 0.0
    %115 = vmatprep.subr.mxu0 0.0
    %116 = vmatpush1.msra.mxu0 0.0
    %117 = vmatprep.subr.mxu0 0.0
    %118 = vmatpush1.msra.mxu0 0.0
    %119 = vmatprep.subr.mxu0 0.0
    %120 = vmatpush1.msra.mxu0 0.0
    %121 = vmatprep.subr.mxu0 0.0
    %122 = vmatpush1.msra.mxu0 0.0
    %123 = vmatprep.subr.mxu0 0.0
    %124 = vmatpush1.msra.mxu0 0.0
    %125 = vmatprep.subr.mxu0 0.0
    %126 = vmatpush1.msra.mxu0 0.0
    %127 = vmatprep.subr.mxu0 0.0
    %128 = vmatpush1.msra.mxu0 0.0
    %129 = vmatprep.subr.mxu0 0.0
    %130 = vmatpush1.msra.mxu0 0.0
    %131 = vmatprep.subr.mxu0 0.0
    %132 = vmatpush1.msra.mxu0 0.0
    %133 = vmatprep.subr.mxu0 0.0
    %134 = vmatpush1.msra.mxu0 0.0
    %135 = vmatprep.subr.mxu0 0.0
    %136 = vmatpush1.msra.mxu0 0.0
    %137 = vmatprep.subr.mxu0 0.0
    %138 = vmatpush1.msra.mxu0 0.0
    %139 = vmatprep.subr.mxu0 0.0
    %140 = vmatpush1.msra.mxu0 0.0
    %141 = vmatprep.subr.mxu0 0.0
    %142 = vmatpush1.msra.mxu0 0.0
    %143 = vmatprep.subr.mxu0 0.0
    %144 = vmatpush1.msra.mxu0 0.0
    %145 = vmatprep.mubr.f32.mxu0 0.0
    %146 = vmatmul.mubr.f32.gmra.mrb[0].mxu0 %v79
    %v147 = vpop.f32.mrb[0].mxu0
    %v148 = vadd.f32 %v75, %v147
    %v149 = vpop.f32.mrb[0].mxu0
    %150 = vdwg.mxu0
    %v151 = vmax.f32 %v148, 0.0
    %s152 = scalar_lea.vmem [#allocation9], 16
    %v153 = vld [vmem:[%s152] sm:$0xff]
    %v154 = vld [vmem:[%s152 + $0x8] sm:$0xff]
    %v155 = vunpack.c.l.bf16 %v153
    %v156 = vunpack.c.h.bf16 %v153
    %v157 = vunpack.c.l.bf16 %v154
    %v158 = vunpack.c.h.bf16 %v154
    %s159 = scalar_lea.vmem [#allocation11], 1
    %v160 = vld [vmem:[%s159] sm:$0x1]
    %v162 = vlaneseq
    %v163 = vshrl.u32 %v162, 7
    %v164 = vsub.s32 0, %v163
    %v165 = vrot.slane %v160, %v164
    %v168 = vsel %vm77, %v151, 0
    %170 = vmatprep.subr.mxu0 0.0
    %171 = vmatpush1.msra.mxu0 %v155
    %172 = vmatprep.subr.mxu0 0.0
    %173 = vmatpush1.msra.mxu0 %v156
    %174 = vmatprep.subr.mxu0 0.0
    %175 = vmatpush1.msra.mxu0 %v157
    %176 = vmatprep.subr.mxu0 0.0
    %177 = vmatpush1.msra.mxu0 %v158
    %178 = vmatprep.subr.mxu0 0.0
    %179 = vmatpush1.msra.mxu0 0.0
    %180 = vmatprep.subr.mxu0 0.0
    %181 = vmatpush1.msra.mxu0 0.0
    %182 = vmatprep.subr.mxu0 0.0
    %183 = vmatpush1.msra.mxu0 0.0
    %184 = vmatprep.subr.mxu0 0.0
    %185 = vmatpush1.msra.mxu0 0.0
    %186 = vmatprep.subr.mxu0 0.0
    %187 = vmatpush1.msra.mxu0 0.0
    %188 = vmatprep.subr.mxu0 0.0
    %189 = vmatpush1.msra.mxu0 0.0
    %190 = vmatprep.subr.mxu0 0.0
    %191 = vmatpush1.msra.mxu0 0.0
    %192 = vmatprep.subr.mxu0 0.0
    %193 = vmatpush1.msra.mxu0 0.0
    %194 = vmatprep.subr.mxu0 0.0
    %195 = vmatpush1.msra.mxu0 0.0
    %196 = vmatprep.subr.mxu0 0.0
    %197 = vmatpush1.msra.mxu0 0.0
    %198 = vmatprep.subr.mxu0 0.0
    %199 = vmatpush1.msra.mxu0 0.0
    %200 = vmatprep.subr.mxu0 0.0
    %201 = vmatpush1.msra.mxu0 0.0
    %202 = vmatprep.subr.mxu0 0.0
    %203 = vmatpush1.msra.mxu0 0.0
    %204 = vmatprep.subr.mxu0 0.0
    %205 = vmatpush1.msra.mxu0 0.0
    %206 = vmatprep.subr.mxu0 0.0
    %207 = vmatpush1.msra.mxu0 0.0
    %208 = vmatprep.subr.mxu0 0.0
    %209 = vmatpush1.msra.mxu0 0.0
    %210 = vmatprep.subr.mxu0 0.0
    %211 = vmatpush1.msra.mxu0 0.0
    %212 = vmatprep.subr.mxu0 0.0
    %213 = vmatpush1.msra.mxu0 0.0
    %214 = vmatprep.subr.mxu0 0.0
    %215 = vmatpush1.msra.mxu0 0.0
    %216 = vmatprep.subr.mxu0 0.0
    %217 = vmatpush1.msra.mxu0 0.0
    %218 = vmatprep.subr.mxu0 0.0
    %219 = vmatpush1.msra.mxu0 0.0
    %220 = vmatprep.subr.mxu0 0.0
    %221 = vmatpush1.msra.mxu0 0.0
    %222 = vmatprep.subr.mxu0 0.0
    %223 = vmatpush1.msra.mxu0 0.0
    %224 = vmatprep.subr.mxu0 0.0
    %225 = vmatpush1.msra.mxu0 0.0
    %226 = vmatprep.subr.mxu0 0.0
    %227 = vmatpush1.msra.mxu0 0.0
    %228 = vmatprep.subr.mxu0 0.0
    %229 = vmatpush1.msra.mxu0 0.0
    %230 = vmatprep.subr.mxu0 0.0
    %231 = vmatpush1.msra.mxu0 0.0
    %232 = vmatprep.subr.mxu0 0.0
    %233 = vmatpush1.msra.mxu0 0.0
    %234 = vmatprep.mubr.f32.mxu0 0.0
    %235 = vmatmul.mubr.f32.gmra.mrb[0].mxu0 %v168
    %v236 = vpop.f32.mrb[0].mxu0
    %v237 = vadd.f32 %v165, %v236
    %v238 = vpop.f32.mrb[0].mxu0
    %239 = vdwg.mxu0
    %v240 = vmax.f32 %v237, 0.0
    %s241 = scalar_lea.vmem [#allocation9], 32
    %v242 = vld [vmem:[%s241] sm:$0xff]
    %v243 = vld [vmem:[%s241 + $0x8] sm:$0xff]
    %v244 = vunpack.c.l.bf16 %v242
    %v245 = vunpack.c.h.bf16 %v242
    %v246 = vunpack.c.l.bf16 %v243
    %v247 = vunpack.c.h.bf16 %v243
    %s248 = scalar_lea.vmem [#allocation11], 2
    %v249 = vld [vmem:[%s248] sm:$0x1]
    %v251 = vlaneseq
    %v252 = vshrl.u32 %v251, 7
    %v253 = vsub.s32 0, %v252
    %v254 = vrot.slane %v249, %v253
    %v257 = vsel %vm77, %v240, 0
    %259 = vmatprep.subr.mxu0 0.0
    %260 = vmatpush1.msra.mxu0 %v244
    %261 = vmatprep.subr.mxu0 0.0
    %262 = vmatpush1.msra.mxu0 %v245
    %263 = vmatprep.subr.mxu0 0.0
    %264 = vmatpush1.msra.mxu0 %v246
    %265 = vmatprep.subr.mxu0 0.0
    %266 = vmatpush1.msra.mxu0 %v247
    %267 = vmatprep.subr.mxu0 0.0
    %268 = vmatpush1.msra.mxu0 0.0
    %269 = vmatprep.subr.mxu0 0.0
    %270 = vmatpush1.msra.mxu0 0.0
    %271 = vmatprep.subr.mxu0 0.0
    %272 = vmatpush1.msra.mxu0 0.0
    %273 = vmatprep.subr.mxu0 0.0
    %274 = vmatpush1.msra.mxu0 0.0
    %275 = vmatprep.subr.mxu0 0.0
    %276 = vmatpush1.msra.mxu0 0.0
    %277 = vmatprep.subr.mxu0 0.0
    %278 = vmatpush1.msra.mxu0 0.0
    %279 = vmatprep.subr.mxu0 0.0
    %280 = vmatpush1.msra.mxu0 0.0
    %281 = vmatprep.subr.mxu0 0.0
    %282 = vmatpush1.msra.mxu0 0.0
    %283 = vmatprep.subr.mxu0 0.0
    %284 = vmatpush1.msra.mxu0 0.0
    %285 = vmatprep.subr.mxu0 0.0
    %286 = vmatpush1.msra.mxu0 0.0
    %287 = vmatprep.subr.mxu0 0.0
    %288 = vmatpush1.msra.mxu0 0.0
    %289 = vmatprep.subr.mxu0 0.0
    %290 = vmatpush1.msra.mxu0 0.0
    %291 = vmatprep.subr.mxu0 0.0
    %292 = vmatpush1.msra.mxu0 0.0
    %293 = vmatprep.subr.mxu0 0.0
    %294 = vmatpush1.msra.mxu0 0.0
    %295 = vmatprep.subr.mxu0 0.0
    %296 = vmatpush1.msra.mxu0 0.0
    %297 = vmatprep.subr.mxu0 0.0
    %298 = vmatpush1.msra.mxu0 0.0
    %299 = vmatprep.subr.mxu0 0.0
    %300 = vmatpush1.msra.mxu0 0.0
    %301 = vmatprep.subr.mxu0 0.0
    %302 = vmatpush1.msra.mxu0 0.0
    %303 = vmatprep.subr.mxu0 0.0
    %304 = vmatpush1.msra.mxu0 0.0
    %305 = vmatprep.subr.mxu0 0.0
    %306 = vmatpush1.msra.mxu0 0.0
    %307 = vmatprep.subr.mxu0 0.0
    %308 = vmatpush1.msra.mxu0 0.0
    %309 = vmatprep.subr.mxu0 0.0
    %310 = vmatpush1.msra.mxu0 0.0
    %311 = vmatprep.subr.mxu0 0.0
    %312 = vmatpush1.msra.mxu0 0.0
    %313 = vmatprep.subr.mxu0 0.0
    %314 = vmatpush1.msra.mxu0 0.0
    %315 = vmatprep.subr.mxu0 0.0
    %316 = vmatpush1.msra.mxu0 0.0
    %317 = vmatprep.subr.mxu0 0.0
    %318 = vmatpush1.msra.mxu0 0.0
    %319 = vmatprep.subr.mxu0 0.0
    %320 = vmatpush1.msra.mxu0 0.0
    %321 = vmatprep.subr.mxu0 0.0
    %322 = vmatpush1.msra.mxu0 0.0
    %323 = vmatprep.mubr.f32.mxu0 0.0
    %324 = vmatmul.mubr.f32.gmra.mrb[0].mxu0 %v257
    %v325 = vpop.f32.mrb[0].mxu0
    %v326 = vadd.f32 %v254, %v325
    %v327 = vpop.f32.mrb[0].mxu0
    %328 = vdwg.mxu0
    %v329 = vmax.f32 %v326, 0.0
    %s330 = scalar_lea.vmem [#allocation9], 48
    %v331 = vld [vmem:[%s330] sm:$0xff]
    %v332 = vld [vmem:[%s330 + $0x8] sm:$0xff]
    %v333 = vunpack.c.l.bf16 %v331
    %v334 = vunpack.c.h.bf16 %v331
    %v335 = vunpack.c.l.bf16 %v332
    %v336 = vunpack.c.h.bf16 %v332
    %s337 = scalar_lea.vmem [#allocation11], 3
    %v338 = vld [vmem:[%s337] sm:$0x1]
    %v340 = vlaneseq
    %v341 = vshrl.u32 %v340, 7
    %v342 = vsub.s32 0, %v341
    %v343 = vrot.slane %v338, %v342
    %v346 = vsel %vm77, %v329, 0
    %348 = vmatprep.subr.mxu0 0.0
    %349 = vmatpush1.msra.mxu0 %v333
    %350 = vmatprep.subr.mxu0 0.0
    %351 = vmatpush1.msra.mxu0 %v334
    %352 = vmatprep.subr.mxu0 0.0
    %353 = vmatpush1.msra.mxu0 %v335
    %354 = vmatprep.subr.mxu0 0.0
    %355 = vmatpush1.msra.mxu0 %v336
    %356 = vmatprep.subr.mxu0 0.0
    %357 = vmatpush1.msra.mxu0 0.0
    %358 = vmatprep.subr.mxu0 0.0
    %359 = vmatpush1.msra.mxu0 0.0
    %360 = vmatprep.subr.mxu0 0.0
    %361 = vmatpush1.msra.mxu0 0.0
    %362 = vmatprep.subr.mxu0 0.0
    %363 = vmatpush1.msra.mxu0 0.0
    %364 = vmatprep.subr.mxu0 0.0
    %365 = vmatpush1.msra.mxu0 0.0
    %366 = vmatprep.subr.mxu0 0.0
    %367 = vmatpush1.msra.mxu0 0.0
    %368 = vmatprep.subr.mxu0 0.0
    %369 = vmatpush1.msra.mxu0 0.0
    %370 = vmatprep.subr.mxu0 0.0
    %371 = vmatpush1.msra.mxu0 0.0
    %372 = vmatprep.subr.mxu0 0.0
    %373 = vmatpush1.msra.mxu0 0.0
    %374 = vmatprep.subr.mxu0 0.0
    %375 = vmatpush1.msra.mxu0 0.0
    %376 = vmatprep.subr.mxu0 0.0
    %377 = vmatpush1.msra.mxu0 0.0
    %378 = vmatprep.subr.mxu0 0.0
    %379 = vmatpush1.msra.mxu0 0.0
    %380 = vmatprep.subr.mxu0 0.0
    %381 = vmatpush1.msra.mxu0 0.0
    %382 = vmatprep.subr.mxu0 0.0
    %383 = vmatpush1.msra.mxu0 0.0
    %384 = vmatprep.subr.mxu0 0.0
    %385 = vmatpush1.msra.mxu0 0.0
    %386 = vmatprep.subr.mxu0 0.0
    %387 = vmatpush1.msra.mxu0 0.0
    %388 = vmatprep.subr.mxu0 0.0
    %389 = vmatpush1.msra.mxu0 0.0
    %390 = vmatprep.subr.mxu0 0.0
    %391 = vmatpush1.msra.mxu0 0.0
    %392 = vmatprep.subr.mxu0 0.0
    %393 = vmatpush1.msra.mxu0 0.0
    %394 = vmatprep.subr.mxu0 0.0
    %395 = vmatpush1.msra.mxu0 0.0
    %396 = vmatprep.subr.mxu0 0.0
    %397 = vmatpush1.msra.mxu0 0.0
    %398 = vmatprep.subr.mxu0 0.0
    %399 = vmatpush1.msra.mxu0 0.0
    %400 = vmatprep.subr.mxu0 0.0
    %401 = vmatpush1.msra.mxu0 0.0
    %402 = vmatprep.subr.mxu0 0.0
    %403 = vmatpush1.msra.mxu0 0.0
    %404 = vmatprep.subr.mxu0 0.0
    %405 = vmatpush1.msra.mxu0 0.0
    %406 = vmatprep.subr.mxu0 0.0
    %407 = vmatpush1.msra.mxu0 0.0
    %408 = vmatprep.subr.mxu0 0.0
    %409 = vmatpush1.msra.mxu0 0.0
    %410 = vmatprep.subr.mxu0 0.0
    %411 = vmatpush1.msra.mxu0 0.0
    %412 = vmatprep.mubr.f32.mxu0 0.0
    %413 = vmatmul.mubr.f32.gmra.mrb[0].mxu0 %v346
    %v414 = vpop.f32.mrb[0].mxu0
    %v415 = vadd.f32 %v343, %v414
    %v416 = vpop.f32.mrb[0].mxu0
    %417 = vdwg.mxu0
    %v418 = vmax.f32 %v415, 0.0
    %s419 = scalar_lea.vmem [#allocation9], 64
    %v420 = vld [vmem:[%s419] sm:$0xff]
    %v421 = vld [vmem:[%s419 + $0x8] sm:$0xff]
    %v422 = vunpack.c.l.bf16 %v420
    %v423 = vunpack.c.h.bf16 %v420
    %v424 = vunpack.c.l.bf16 %v421
    %v425 = vunpack.c.h.bf16 %v421
    %s426 = scalar_lea.vmem [#allocation11], 4
    %v427 = vld [vmem:[%s426] sm:$0x1]
    %v429 = vlaneseq
    %v430 = vshrl.u32 %v429, 7
    %v431 = vsub.s32 0, %v430
    %v432 = vrot.slane %v427, %v431
    %v435 = vsel %vm77, %v418, 0
    %437 = vmatprep.subr.mxu0 0.0
    %438 = vmatpush1.msra.mxu0 %v422
    %439 = vmatprep.subr.mxu0 0.0
    %440 = vmatpush1.msra.mxu0 %v423
    %441 = vmatprep.subr.mxu0 0.0
    %442 = vmatpush1.msra.mxu0 %v424
    %443 = vmatprep.subr.mxu0 0.0
    %444 = vmatpush1.msra.mxu0 %v425
    %445 = vmatprep.subr.mxu0 0.0
    %446 = vmatpush1.msra.mxu0 0.0
    %447 = vmatprep.subr.mxu0 0.0
    %448 = vmatpush1.msra.mxu0 0.0
    %449 = vmatprep.subr.mxu0 0.0
    %450 = vmatpush1.msra.mxu0 0.0
    %451 = vmatprep.subr.mxu0 0.0
    %452 = vmatpush1.msra.mxu0 0.0
    %453 = vmatprep.subr.mxu0 0.0
    %454 = vmatpush1.msra.mxu0 0.0
    %455 = vmatprep.subr.mxu0 0.0
    %456 = vmatpush1.msra.mxu0 0.0
    %457 = vmatprep.subr.mxu0 0.0
    %458 = vmatpush1.msra.mxu0 0.0
    %459 = vmatprep.subr.mxu0 0.0
    %460 = vmatpush1.msra.mxu0 0.0
    %461 = vmatprep.subr.mxu0 0.0
    %462 = vmatpush1.msra.mxu0 0.0
    %463 = vmatprep.subr.mxu0 0.0
    %464 = vmatpush1.msra.mxu0 0.0
    %465 = vmatprep.subr.mxu0 0.0
    %466 = vmatpush1.msra.mxu0 0.0
    %467 = vmatprep.subr.mxu0 0.0
    %468 = vmatpush1.msra.mxu0 0.0
    %469 = vmatprep.subr.mxu0 0.0
    %470 = vmatpush1.msra.mxu0 0.0
    %471 = vmatprep.subr.mxu0 0.0
    %472 = vmatpush1.msra.mxu0 0.0
    %473 = vmatprep.subr.mxu0 0.0
    %474 = vmatpush1.msra.mxu0 0.0
    %475 = vmatprep.subr.mxu0 0.0
    %476 = vmatpush1.msra.mxu0 0.0
    %477 = vmatprep.subr.mxu0 0.0
    %478 = vmatpush1.msra.mxu0 0.0
    %479 = vmatprep.subr.mxu0 0.0
    %480 = vmatpush1.msra.mxu0 0.0
    %481 = vmatprep.subr.mxu0 0.0
    %482 = vmatpush1.msra.mxu0 0.0
    %483 = vmatprep.subr.mxu0 0.0
    %484 = vmatpush1.msra.mxu0 0.0
    %485 = vmatprep.subr.mxu0 0.0
    %486 = vmatpush1.msra.mxu0 0.0
    %487 = vmatprep.subr.mxu0 0.0
    %488 = vmatpush1.msra.mxu0 0.0
    %489 = vmatprep.subr.mxu0 0.0
    %490 = vmatpush1.msra.mxu0 0.0
    %491 = vmatprep.subr.mxu0 0.0
    %492 = vmatpush1.msra.mxu0 0.0
    %493 = vmatprep.subr.mxu0 0.0
    %494 = vmatpush1.msra.mxu0 0.0
    %495 = vmatprep.subr.mxu0 0.0
    %496 = vmatpush1.msra.mxu0 0.0
    %497 = vmatprep.subr.mxu0 0.0
    %498 = vmatpush1.msra.mxu0 0.0
    %499 = vmatprep.subr.mxu0 0.0
    %500 = vmatpush1.msra.mxu0 0.0
    %501 = vmatprep.mubr.f32.mxu0 0.0
    %502 = vmatmul.mubr.f32.gmra.mrb[0].mxu0 %v435
    %v503 = vpop.f32.mrb[0].mxu0
    %v504 = vadd.f32 %v432, %v503
    %v505 = vpop.f32.mrb[0].mxu0
    %506 = vdwg.mxu0
    %v507 = vmax.f32 %v504, 0.0
    %s508 = scalar_lea.vmem [#allocation9], 80
    %v509 = vld [vmem:[%s508] sm:$0xff]
    %v510 = vld [vmem:[%s508 + $0x8] sm:$0xff]
    %v511 = vunpack.c.l.bf16 %v509
    %v512 = vunpack.c.h.bf16 %v509
    %v513 = vunpack.c.l.bf16 %v510
    %v514 = vunpack.c.h.bf16 %v510
    %s515 = scalar_lea.vmem [#allocation11], 5
    %v516 = vld [vmem:[%s515] sm:$0x1]
    %v518 = vlaneseq
    %v519 = vshrl.u32 %v518, 7
    %v520 = vsub.s32 0, %v519
    %v521 = vrot.slane %v516, %v520
    %v524 = vsel %vm77, %v507, 0
    %526 = vmatprep.subr.mxu0 0.0
    %527 = vmatpush1.msra.mxu0 %v511
    %528 = vmatprep.subr.mxu0 0.0
    %529 = vmatpush1.msra.mxu0 %v512
    %530 = vmatprep.subr.mxu0 0.0
    %531 = vmatpush1.msra.mxu0 %v513
    %532 = vmatprep.subr.mxu0 0.0
    %533 = vmatpush1.msra.mxu0 %v514
    %534 = vmatprep.subr.mxu0 0.0
    %535 = vmatpush1.msra.mxu0 0.0
    %536 = vmatprep.subr.mxu0 0.0
    %537 = vmatpush1.msra.mxu0 0.0
    %538 = vmatprep.subr.mxu0 0.0
    %539 = vmatpush1.msra.mxu0 0.0
    %540 = vmatprep.subr.mxu0 0.0
    %541 = vmatpush1.msra.mxu0 0.0
    %542 = vmatprep.subr.mxu0 0.0
    %543 = vmatpush1.msra.mxu0 0.0
    %544 = vmatprep.subr.mxu0 0.0
    %545 = vmatpush1.msra.mxu0 0.0
    %546 = vmatprep.subr.mxu0 0.0
    %547 = vmatpush1.msra.mxu0 0.0
    %548 = vmatprep.subr.mxu0 0.0
    %549 = vmatpush1.msra.mxu0 0.0
    %550 = vmatprep.subr.mxu0 0.0
    %551 = vmatpush1.msra.mxu0 0.0
    %552 = vmatprep.subr.mxu0 0.0
    %553 = vmatpush1.msra.mxu0 0.0
    %554 = vmatprep.subr.mxu0 0.0
    %555 = vmatpush1.msra.mxu0 0.0
    %556 = vmatprep.subr.mxu0 0.0
    %557 = vmatpush1.msra.mxu0 0.0
    %558 = vmatprep.subr.mxu0 0.0
    %559 = vmatpush1.msra.mxu0 0.0
    %560 = vmatprep.subr.mxu0 0.0
    %561 = vmatpush1.msra.mxu0 0.0
    %562 = vmatprep.subr.mxu0 0.0
    %563 = vmatpush1.msra.mxu0 0.0
    %564 = vmatprep.subr.mxu0 0.0
    %565 = vmatpush1.msra.mxu0 0.0
    %566 = vmatprep.subr.mxu0 0.0
    %567 = vmatpush1.msra.mxu0 0.0
    %568 = vmatprep.subr.mxu0 0.0
    %569 = vmatpush1.msra.mxu0 0.0
    %570 = vmatprep.subr.mxu0 0.0
    %571 = vmatpush1.msra.mxu0 0.0
    %572 = vmatprep.subr.mxu0 0.0
    %573 = vmatpush1.msra.mxu0 0.0
    %574 = vmatprep.subr.mxu0 0.0
    %575 = vmatpush1.msra.mxu0 0.0
    %576 = vmatprep.subr.mxu0 0.0
    %577 = vmatpush1.msra.mxu0 0.0
    %578 = vmatprep.subr.mxu0 0.0
    %579 = vmatpush1.msra.mxu0 0.0
    %580 = vmatprep.subr.mxu0 0.0
    %581 = vmatpush1.msra.mxu0 0.0
    %582 = vmatprep.subr.mxu0 0.0
    %583 = vmatpush1.msra.mxu0 0.0
    %584 = vmatprep.subr.mxu0 0.0
    %585 = vmatpush1.msra.mxu0 0.0
    %586 = vmatprep.subr.mxu0 0.0
    %587 = vmatpush1.msra.mxu0 0.0
    %588 = vmatprep.subr.mxu0 0.0
    %589 = vmatpush1.msra.mxu0 0.0
    %590 = vmatprep.mubr.f32.mxu0 0.0
    %591 = vmatmul.mubr.f32.gmra.mrb[0].mxu0 %v524
    %v592 = vpop.f32.mrb[0].mxu0
    %v593 = vadd.f32 %v521, %v592
    %v594 = vpop.f32.mrb[0].mxu0
    %595 = vdwg.mxu0
    %v596 = vmax.f32 %v593, 0.0
    %s597 = scalar_lea.vmem [#allocation9], 96
    %v598 = vld [vmem:[%s597] sm:$0xff]
    %v599 = vld [vmem:[%s597 + $0x8] sm:$0xff]
    %v600 = vunpack.c.l.bf16 %v598
    %v601 = vunpack.c.h.bf16 %v598
    %v602 = vunpack.c.l.bf16 %v599
    %v603 = vunpack.c.h.bf16 %v599
    %s604 = scalar_lea.vmem [#allocation11], 6
    %v605 = vld [vmem:[%s604] sm:$0x1]
    %v607 = vlaneseq
    %v608 = vshrl.u32 %v607, 7
    %v609 = vsub.s32 0, %v608
    %v610 = vrot.slane %v605, %v609
    %v613 = vsel %vm77, %v596, 0
    %615 = vmatprep.subr.mxu0 0.0
    %616 = vmatpush1.msra.mxu0 %v600
    %617 = vmatprep.subr.mxu0 0.0
    %618 = vmatpush1.msra.mxu0 %v601
    %619 = vmatprep.subr.mxu0 0.0
    %620 = vmatpush1.msra.mxu0 %v602
    %621 = vmatprep.subr.mxu0 0.0
    %622 = vmatpush1.msra.mxu0 %v603
    %623 = vmatprep.subr.mxu0 0.0
    %624 = vmatpush1.msra.mxu0 0.0
    %625 = vmatprep.subr.mxu0 0.0
    %626 = vmatpush1.msra.mxu0 0.0
    %627 = vmatprep.subr.mxu0 0.0
    %628 = vmatpush1.msra.mxu0 0.0
    %629 = vmatprep.subr.mxu0 0.0
    %630 = vmatpush1.msra.mxu0 0.0
    %631 = vmatprep.subr.mxu0 0.0
    %632 = vmatpush1.msra.mxu0 0.0
    %633 = vmatprep.subr.mxu0 0.0
    %634 = vmatpush1.msra.mxu0 0.0
    %635 = vmatprep.subr.mxu0 0.0
    %636 = vmatpush1.msra.mxu0 0.0
    %637 = vmatprep.subr.mxu0 0.0
    %638 = vmatpush1.msra.mxu0 0.0
    %639 = vmatprep.subr.mxu0 0.0
    %640 = vmatpush1.msra.mxu0 0.0
    %641 = vmatprep.subr.mxu0 0.0
    %642 = vmatpush1.msra.mxu0 0.0
    %643 = vmatprep.subr.mxu0 0.0
    %644 = vmatpush1.msra.mxu0 0.0
    %645 = vmatprep.subr.mxu0 0.0
    %646 = vmatpush1.msra.mxu0 0.0
    %647 = vmatprep.subr.mxu0 0.0
    %648 = vmatpush1.msra.mxu0 0.0
    %649 = vmatprep.subr.mxu0 0.0
    %650 = vmatpush1.msra.mxu0 0.0
    %651 = vmatprep.subr.mxu0 0.0
    %652 = vmatpush1.msra.mxu0 0.0
    %653 = vmatprep.subr.mxu0 0.0
    %654 = vmatpush1.msra.mxu0 0.0
    %655 = vmatprep.subr.mxu0 0.0
    %656 = vmatpush1.msra.mxu0 0.0
    %657 = vmatprep.subr.mxu0 0.0
    %658 = vmatpush1.msra.mxu0 0.0
    %659 = vmatprep.subr.mxu0 0.0
    %660 = vmatpush1.msra.mxu0 0.0
    %661 = vmatprep.subr.mxu0 0.0
    %662 = vmatpush1.msra.mxu0 0.0
    %663 = vmatprep.subr.mxu0 0.0
    %664 = vmatpush1.msra.mxu0 0.0
    %665 = vmatprep.subr.mxu0 0.0
    %666 = vmatpush1.msra.mxu0 0.0
    %667 = vmatprep.subr.mxu0 0.0
    %668 = vmatpush1.msra.mxu0 0.0
    %669 = vmatprep.subr.mxu0 0.0
    %670 = vmatpush1.msra.mxu0 0.0
    %671 = vmatprep.subr.mxu0 0.0
    %672 = vmatpush1.msra.mxu0 0.0
    %673 = vmatprep.subr.mxu0 0.0
    %674 = vmatpush1.msra.mxu0 0.0
    %675 = vmatprep.subr.mxu0 0.0
    %676 = vmatpush1.msra.mxu0 0.0
    %677 = vmatprep.subr.mxu0 0.0
    %678 = vmatpush1.msra.mxu0 0.0
    %679 = vmatprep.mubr.f32.mxu0 0.0
    %680 = vmatmul.mubr.f32.gmra.mrb[0].mxu0 %v613
    %v681 = vpop.f32.mrb[0].mxu0
    %v682 = vadd.f32 %v610, %v681
    %v683 = vpop.f32.mrb[0].mxu0
    %684 = vdwg.mxu0
    %v685 = vmax.f32 %v682, 0.0
    %s686 = scalar_lea.vmem [#allocation9], 112
    %v687 = vld [vmem:[%s686] sm:$0xff]
    %v688 = vld [vmem:[%s686 + $0x8] sm:$0xff]
    %v689 = vunpack.c.l.bf16 %v687
    %v690 = vunpack.c.h.bf16 %v687
    %v691 = vunpack.c.l.bf16 %v688
    %v692 = vunpack.c.h.bf16 %v688
    %s693 = scalar_lea.vmem [#allocation11], 7
    %v694 = vld [vmem:[%s693] sm:$0x1]
    %v696 = vlaneseq
    %v697 = vshrl.u32 %v696, 7
    %v698 = vsub.s32 0, %v697
    %v699 = vrot.slane %v694, %v698
    %v702 = vsel %vm77, %v685, 0
    %704 = vmatprep.subr.mxu0 0.0
    %705 = vmatpush1.msra.mxu0 %v689
    %706 = vmatprep.subr.mxu0 0.0
    %707 = vmatpush1.msra.mxu0 %v690
    %708 = vmatprep.subr.mxu0 0.0
    %709 = vmatpush1.msra.mxu0 %v691
    %710 = vmatprep.subr.mxu0 0.0
    %711 = vmatpush1.msra.mxu0 %v692
    %712 = vmatprep.subr.mxu0 0.0
    %713 = vmatpush1.msra.mxu0 0.0
    %714 = vmatprep.subr.mxu0 0.0
    %715 = vmatpush1.msra.mxu0 0.0
    %716 = vmatprep.subr.mxu0 0.0
    %717 = vmatpush1.msra.mxu0 0.0
    %718 = vmatprep.subr.mxu0 0.0
    %719 = vmatpush1.msra.mxu0 0.0
    %720 = vmatprep.subr.mxu0 0.0
    %721 = vmatpush1.msra.mxu0 0.0
    %722 = vmatprep.subr.mxu0 0.0
    %723 = vmatpush1.msra.mxu0 0.0
    %724 = vmatprep.subr.mxu0 0.0
    %725 = vmatpush1.msra.mxu0 0.0
    %726 = vmatprep.subr.mxu0 0.0
    %727 = vmatpush1.msra.mxu0 0.0
    %728 = vmatprep.subr.mxu0 0.0
    %729 = vmatpush1.msra.mxu0 0.0
    %730 = vmatprep.subr.mxu0 0.0
    %731 = vmatpush1.msra.mxu0 0.0
    %732 = vmatprep.subr.mxu0 0.0
    %733 = vmatpush1.msra.mxu0 0.0
    %734 = vmatprep.subr.mxu0 0.0
    %735 = vmatpush1.msra.mxu0 0.0
    %736 = vmatprep.subr.mxu0 0.0
    %737 = vmatpush1.msra.mxu0 0.0
    %738 = vmatprep.subr.mxu0 0.0
    %739 = vmatpush1.msra.mxu0 0.0
    %740 = vmatprep.subr.mxu0 0.0
    %741 = vmatpush1.msra.mxu0 0.0
    %742 = vmatprep.subr.mxu0 0.0
    %743 = vmatpush1.msra.mxu0 0.0
    %744 = vmatprep.subr.mxu0 0.0
    %745 = vmatpush1.msra.mxu0 0.0
    %746 = vmatprep.subr.mxu0 0.0
    %747 = vmatpush1.msra.mxu0 0.0
    %748 = vmatprep.subr.mxu0 0.0
    %749 = vmatpush1.msra.mxu0 0.0
    %750 = vmatprep.subr.mxu0 0.0
    %751 = vmatpush1.msra.mxu0 0.0
    %752 = vmatprep.subr.mxu0 0.0
    %753 = vmatpush1.msra.mxu0 0.0
    %754 = vmatprep.subr.mxu0 0.0
    %755 = vmatpush1.msra.mxu0 0.0
    %756 = vmatprep.subr.mxu0 0.0
    %757 = vmatpush1.msra.mxu0 0.0
    %758 = vmatprep.subr.mxu0 0.0
    %759 = vmatpush1.msra.mxu0 0.0
    %760 = vmatprep.subr.mxu0 0.0
    %761 = vmatpush1.msra.mxu0 0.0
    %762 = vmatprep.subr.mxu0 0.0
    %763 = vmatpush1.msra.mxu0 0.0
    %764 = vmatprep.subr.mxu0 0.0
    %765 = vmatpush1.msra.mxu0 0.0
    %766 = vmatprep.subr.mxu0 0.0
    %767 = vmatpush1.msra.mxu0 0.0
    %768 = vmatprep.mubr.f32.mxu0 0.0
    %769 = vmatmul.mubr.f32.gmra.mrb[0].mxu0 %v702
    %v770 = vpop.f32.mrb[0].mxu0
    %v771 = vadd.f32 %v699, %v770
    %v772 = vpop.f32.mrb[0].mxu0
    %773 = vdwg.mxu0
    %v774 = vmul.f32 %v771, 0.5
    %v775 = vtanh.pop %v774
    %v776 = vmul.f32 %v775, 0.5
    %v777 = vadd.f32 %v776, 0.5
    %778 = vst [vmem:[%s4] sm:$0xff] %v777
    // Predicated region
    $region26: #{_lambda_.2} parent=1 // pred_check
      _
    $region27: #{_lambda_.2} parent=1 // pred_check_branch
      %780 = sbr.rel (0) target = $region29
    $region28: #{_lambda_.2} parent=1 // pred_region
      _
    $region29: #{_lambda_.2} parent=1 // pred_fallthru
      _
    // Predicated region
    $region30: #{_lambda_.2} parent=1 // pred_check
      _
    $region31: #{_lambda_.2} parent=1 // pred_check_branch
      %782 = sbr.rel (0) target = $region33
    $region32: #{_lambda_.2} parent=1 // pred_region
      _
    $region33: #{_lambda_.2} parent=1 // pred_fallthru
      _
    %783 = vsyncpa [#allocation8], 1
    %784 = vsyncpa [#allocation10], 1

</llo_original>
